<compile_context>
chip_gen: v7x
topology: tpu7x:2x2x1
jax: 0.10.0
libtpu: 0.0.40
codegen_flags: <defaults>
</compile_context>

<pallas_src>
import jax
import jax.numpy as jnp
from jax.experimental import pallas as pl
from jax.experimental.pallas import tpu as pltpu

_LANE = 128
_NEG_INF = -1e30                      # finite in f32; must NOT be cast to bf16
_VMEM_BUDGET = 40 * 1024 * 1024       # per-call working-set budget (< v7x 64 MiB/TC)


def _round_up(x, m):
    return ((x + m - 1) // m) * m


# --------------------------------------------------------------------------
# Kernel: fused hidden2labels Linear + softmax over the lane-padded label dim.
# --------------------------------------------------------------------------
def _head_kernel(x_ref, w_ref, b_ref, out_ref):
    # MXU matmul with f32 accumulation; x/w streamed in their native dtype.
    scores = jnp.dot(x_ref[...], w_ref[...],
                     preferred_element_type=jnp.float32) + b_ref[...]
    # Numerically-stable softmax.  Padded label columns carry bias = -1e30 (f32)
    # so exp(pad - max) underflows to exactly 0 and never perturbs the denom.
    m = jnp.max(scores, axis=-1, keepdims=True)
    e = jnp.exp(scores - m)
    denom = jnp.sum(e, axis=-1, keepdims=True)
    out_ref[...] = (e * (1.0 / denom)).astype(out_ref.dtype)


# --------------------------------------------------------------------------
# One-time parameter preparation (hoisted out of the per-call path).
# --------------------------------------------------------------------------
def prepare_head_params(w, b):
    """Pad Linear(H, L) params to a lane-dense label dim Lp = k*128.  Call once."""
    H, L = w.shape
    Lp = _round_up(max(L, 1), _LANE)
    w_p = jnp.zeros((H, Lp), w.dtype).at[:, :L].set(w)
    # Bias kept in f32 on the add path: -1e30 stays finite (it would be -inf in
    # bf16) and guarantees exact zeros for the padded softmax columns.
    b_p = jnp.full((1, Lp), _NEG_INF, jnp.float32).at[0, :L].set(
        b.astype(jnp.float32))
    return w_p, b_p, L


def _pick_tm(M, H, Lp, x_itemsize, w_itemsize, out_itemsize, tm_max=1024):
    """Row-tile choice: big tiles for DMA efficiency, >=2 grid steps for v7x
    megacore when M is large enough, and a VMEM working-set cap."""
    def vmem_bytes(t):
        return (2 * t * H * x_itemsize        # x tile, double-buffered
                + 2 * H * Lp * w_itemsize     # weight (resident, 2 buffers)
                + 2 * t * Lp * out_itemsize   # output tile, double-buffered
                + 2 * Lp * 4)                 # bias
    if M <= 256:
        tm = M                                # single block (full-dim escape)
    elif M <= tm_max:
        tm = _round_up(-(-M // 2), 8)         # 2 balanced steps -> both v7x TCs
    else:
        tm = tm_max
    while tm >= 16 and tm % 8 == 0 and vmem_bytes(tm) > _VMEM_BUDGET:
        tm = max(8, _round_up(tm // 2, 8))
    return tm, vmem_bytes(tm)


# --------------------------------------------------------------------------
# pallas_call wrapper: (M, H) x (H, Lp) -> softmax probs (M, Lp).
# --------------------------------------------------------------------------
def bert_head_linear_softmax(x2d, w_p, b_p, *, out_dtype=jnp.float32,
                             tm_max=1024):
    M, H = x2d.shape
    Lp = w_p.shape[1]
    x_item = jnp.dtype(x2d.dtype).itemsize
    w_item = jnp.dtype(w_p.dtype).itemsize
    o_item = jnp.dtype(out_dtype).itemsize

    tm, needed_vmem = _pick_tm(M, H, Lp, x_item, w_item, o_item, tm_max=tm_max)
    grid = (pl.cdiv(M, tm),)

    cost = pl.CostEstimate(
        flops=2 * M * H * Lp,
        transcendentals=M * Lp,
        bytes_accessed=M * H * x_item + H * Lp * w_item + Lp * 4
                       + M * Lp * o_item)

    vmem_limit = min(max(needed_vmem + (4 << 20), 32 << 20), 56 << 20)

    return pl.pallas_call(
        _head_kernel,
        out_shape=jax.ShapeDtypeStruct((M, Lp), out_dtype),
        grid_spec=pltpu.PrefetchScalarGridSpec(
            num_scalar_prefetch=0,
            grid=grid,
            in_specs=[
                pl.BlockSpec((tm, H), lambda i: (i, 0)),   # activation row tile
                pl.BlockSpec((H, Lp), lambda i: (0, 0)),   # full padded weight
                pl.BlockSpec((1, Lp), lambda i: (0, 0)),   # padded bias row
            ],
            out_specs=pl.BlockSpec((tm, Lp), lambda i: (i, 0)),
        ),
        compiler_params=pltpu.CompilerParams(
            dimension_semantics=("parallel",),
            vmem_limit_bytes=vmem_limit),
        cost_estimate=cost,
    )(x2d, w_p, b_p)


# --------------------------------------------------------------------------
# Full BERTHead inference forward (active config).
# --------------------------------------------------------------------------
def bert_head_forward(seq_repr, labeled_tokens_mask, w_p, b_p, num_labels, *,
                      out_dtype=jnp.float32):
    """Returns (label_probs, new_padding_mask).

    Equivalent to BOND's apply_mask -> dropout(eval) -> Linear -> softmax, but
    the Linear+softmax runs on the original token order and the compaction is
    applied to the (narrow) probs instead of the hidden states.
    """
    B, S, H = seq_repr.shape
    Lp = w_p.shape[1]

    # Head on (B*S, H); nn.Dropout is identity in eval mode.
    probs = bert_head_linear_softmax(
        seq_repr.reshape(B * S, H), w_p, b_p,
        out_dtype=out_dtype).reshape(B, S, Lp)

    # apply_mask compaction on the probs via a cumsum-based stable partition
    # (no XLA sort): labeled tokens move to the front in order; trailing
    # positions take softmax(bias), exactly what zeroed hidden states produce
    # through the head in the original module.
    mask = labeled_tokens_mask
    counts = jnp.sum(mask, axis=1)
    pos_in_kept = jnp.cumsum(mask, axis=1) - 1                 # (B, S)
    dest = jnp.where(mask, pos_in_kept, S)                     # dropped -> slot S
    batch_idx = jnp.arange(B, dtype=jnp.int32)[:, None]
    src = jnp.zeros((B, S + 1), jnp.int32).at[batch_idx, dest].set(
        jnp.arange(S, dtype=jnp.int32)[None, :])[:, :S]        # inverse perm
    compacted = jnp.take_along_axis(probs, src[:, :, None], axis=1)

    new_padding_mask = jnp.arange(S)[None, :] < counts[:, None]
    pad_probs = jax.nn.softmax(b_p, axis=-1).astype(out_dtype)  # (1, Lp)
    label_probs = jnp.where(new_padding_mask[:, :, None], compacted,
                            pad_probs[None, :, :])
    # TODO(synk): BOND's apply_mask also trims the padded length to the
    # batch-wide max labeled-token count; we keep static seq_len S and rely on
    # new_padding_mask downstream instead.
    return label_probs[..., :num_labels], new_padding_mask


# --------------------------------------------------------------------------
# Pure-JAX reference (mirrors the PyTorch module) for correctness checking.
# --------------------------------------------------------------------------
def _ref_forward(seq_repr, mask, w, b):
    B, S, H = seq_repr.shape
    order = jnp.argsort(~mask, axis=1, stable=True)
    hidden = jnp.take_along_axis(seq_repr, order[:, :, None], axis=1)
    counts = jnp.sum(mask, axis=1)
    valid = jnp.arange(S)[None, :] < counts[:, None]
    hidden = jnp.where(valid[:, :, None], hidden, 0.0)          # zero-padded rows
    scores = hidden @ w + b
    return jax.nn.softmax(scores, axis=-1), valid


if __name__ == "__main__":
    # Small shapes consistent with the module: batch=2, seq=16, hidden=32, labels=8
    B, S, H, L = 2, 16, 32, 8

    key = jax.random.PRNGKey(0)
    k_x, k_m, k_w = jax.random.split(key, 3)

    seq_repr = jax.random.normal(k_x, (B, S, H), dtype=jnp.float32)
    labeled_tokens_mask = jax.random.bernoulli(k_m, 0.7, (B, S))

    # Parameter init mirroring nn.Linear(H, L):
    #   weight ~ U(-1/sqrt(H), 1/sqrt(H)); bias zeros with bias[0] = 6
    bound = 1.0 / (H ** 0.5)
    w = jax.random.uniform(k_w, (H, L), minval=-bound, maxval=bound,
                           dtype=jnp.float32)
    b = jnp.zeros((L,), jnp.float32).at[0].set(6.0)

    # One-time (hoisted) parameter preparation.
    w_p, b_p, num_labels = prepare_head_params(w, b)

    label_probs, new_padding_mask = bert_head_forward(
        seq_repr, labeled_tokens_mask, w_p, b_p, num_labels)
    label_probs = jax.block_until_ready(label_probs)

    # Sanity checks: shape, softmax rows summing to 1, and match vs pure-JAX ref.
    assert label_probs.shape == (B, S, L)
    assert bool(jnp.allclose(jnp.sum(label_probs, axis=-1), 1.0, atol=1e-5))
    ref_probs, ref_mask = _ref_forward(seq_repr, labeled_tokens_mask, w, b)
    assert bool(jnp.array_equal(new_padding_mask, ref_mask))
    assert bool(jnp.allclose(label_probs, ref_probs, atol=1e-4))

    print("KERNEL_OK")
</pallas_src>

<mosaic_0001>
module attributes {stable_mosaic.version = 11 : i64} {
  func.func @_head_kernel(%arg0: i32, %arg1: memref<32x32xf32, #tpu.memory_space<vmem>>, %arg2: memref<32x128xf32, #tpu.memory_space<vmem>>, %arg3: memref<1x128xf32, #tpu.memory_space<vmem>>, %arg4: memref<32x128xf32, #tpu.memory_space<vmem>>) attributes {dimension_semantics = [#tpu.dimension_semantics<parallel>], iteration_bounds = array<i64: 1>, scalar_prefetch = 0 : i64, scratch_operands = 0 : i64, tpu.core_type = #tpu.core_type<tc>, window_params = [{transform_indices = @transform_0, window_bounds = array<i64: 32, 32>}, {pipeline_mode = #tpu.pipeline_mode<synchronous>, transform_indices = @transform_1, window_bounds = array<i64: 32, 128>}, {pipeline_mode = #tpu.pipeline_mode<synchronous>, transform_indices = @transform_2, window_bounds = array<i64: 1, 128>}, {transform_indices = @transform_3, window_bounds = array<i64: 32, 128>}]} {
    %c0 = arith.constant 0 : index
    %c0_0 = arith.constant 0 : index
    %0 = vector.load %arg1[%c0, %c0_0] : memref<32x32xf32, #tpu.memory_space<vmem>>, vector<32x32xf32>
    %c0_1 = arith.constant 0 : index
    %c0_2 = arith.constant 0 : index
    %1 = vector.load %arg2[%c0_1, %c0_2] : memref<32x128xf32, #tpu.memory_space<vmem>>, vector<32x128xf32>
    %cst = arith.constant dense<0.000000e+00> : vector<32x128xf32>
    %2 = tpu.matmul %0, %1, %cst {dimension_numbers = #tpu.dot_dimension_numbers<[1], [0], [0], [1], [0, 0, 1, 1], [], []>} : vector<32x32xf32>, vector<32x128xf32>, vector<32x128xf32> -> vector<32x128xf32>
    %c0_3 = arith.constant 0 : index
    %c0_4 = arith.constant 0 : index
    %3 = vector.load %arg3[%c0_3, %c0_4] : memref<1x128xf32, #tpu.memory_space<vmem>>, vector<1x128xf32>
    %4 = vector.broadcast %3 : vector<1x128xf32> to vector<32x128xf32>
    %5 = arith.addf %2, %4 : vector<32x128xf32>
    %cst_5 = arith.constant dense<0xFF800000> : vector<32xf32>
    %6 = vector.multi_reduction <maximumf>, %5, %cst_5 [1] : vector<32x128xf32> to vector<32xf32>
    %7 = vector.shape_cast %6 : vector<32xf32> to vector<32x1xf32>
    %8 = vector.broadcast %7 : vector<32x1xf32> to vector<32x128xf32>
    %9 = arith.subf %5, %8 : vector<32x128xf32>
    %10 = math.exp %9 : vector<32x128xf32>
    %cst_6 = arith.constant dense<0.000000e+00> : vector<32xf32>
    %11 = vector.multi_reduction <add>, %10, %cst_6 [1] : vector<32x128xf32> to vector<32xf32>
    %12 = vector.shape_cast %11 : vector<32xf32> to vector<32x1xf32>
    %cst_7 = arith.constant 1.000000e+00 : f32
    %13 = vector.broadcast %cst_7 : f32 to vector<32x1xf32>
    %14 = arith.divf %13, %12 : vector<32x1xf32>
    %15 = vector.broadcast %14 : vector<32x1xf32> to vector<32x128xf32>
    %16 = arith.mulf %10, %15 : vector<32x128xf32>
    %c0_8 = arith.constant 0 : index
    %c0_9 = arith.constant 0 : index
    %17 = vector.load %arg4[%c0_8, %c0_9] : memref<32x128xf32, #tpu.memory_space<vmem>>, vector<32x128xf32>
    tpu.vector_store %arg4[%c0_8, %c0_9], %16 {strides = array<i32>} : memref<32x128xf32, #tpu.memory_space<vmem>>, vector<32x128xf32>,
    return
  }
  func.func @transform_0(%arg0: i32) -> (i32, i32) {
    %c0_i32 = arith.constant 0 : i32
    %c0_i32_0 = arith.constant 0 : i32
    return %arg0, %c0_i32 : i32, i32
  }
  func.func @transform_1(%arg0: i32) -> (i32, i32) {
    %c0_i32 = arith.constant 0 : i32
    %c0_i32_0 = arith.constant 0 : i32
    %c0_i32_1 = arith.constant 0 : i32
    return %c0_i32, %c0_i32_0 : i32, i32
  }
  func.func @transform_2(%arg0: i32) -> (i32, i32) {
    %c0_i32 = arith.constant 0 : i32
    %c0_i32_0 = arith.constant 0 : i32
    %c0_i32_1 = arith.constant 0 : i32
    return %c0_i32, %c0_i32_0 : i32, i32
  }
  func.func @transform_3(%arg0: i32) -> (i32, i32) {
    %c0_i32 = arith.constant 0 : i32
    %c0_i32_0 = arith.constant 0 : i32
    return %arg0, %c0_i32 : i32, i32
  }
}

</mosaic_0001>

<llo_original>
// kernel: tpu_custom_call.1
$region0: #{tpu_custom_call.1}
  #allocation0 [shape = 'u32[]', space=smem, size = 0x4, offset = 0x4, fixed_abs, tag = 'smem constant byte address 0x4 - core index']
  #allocation1 [shape = 'u32[144,128]{1,0:T(1,128)}', space=vmem, size = 0x12000, scoped, tag = 'internal scratch']
  %s0 = inlined_call_operand.hbm [shape: f32[32,32], index: 0, kind: input, shape index: {}]
  %s1 = inlined_call_operand.hbm [shape: f32[32,128], index: 1, kind: input, shape index: {}]
  %s2 = inlined_call_operand.vmem [shape: f32[1,128], index: 2, kind: input, shape index: {}]
  %s3 = inlined_call_operand.hbm [shape: f32[32,128], index: 3, kind: output, shape index: {}]
  %s4 = sld [smem:[#allocation0]]
  $region30: #{tpu_custom_call.1} parent=0
    _
  %s6 = ssub.s32 1, %s4
  %s7 = scalar_select 0, %s6, %s4
  $region1: #{tpu_custom_call.1} parent=0
    #allocation2 [shape = 'u8[16384]{0}', space=vmem, size = 0x4000, scoped, tag = 'input window, operand 0, single buffered']
    #allocation3 [shape = 's32[1]{0}', space=sflag, size = 0x4, scoped, tag = 'scoped memory for tpu_custom_call.1']
    #allocation4 [shape = 's32[1]{0}', space=sflag, size = 0x4, scoped, tag = 'scoped memory for tpu_custom_call.1']
    #allocation5 [shape = 'u8[16384]{0}', space=vmem, size = 0x4000, scoped, tag = 'input window, operand 1, single buffered']
    #allocation6 [shape = 's32[1]{0}', space=sflag, size = 0x4, scoped, tag = 'scoped memory for tpu_custom_call.1']
    #allocation7 [shape = 'u8[16384]{0}', space=vmem, size = 0x4000, scoped, tag = 'output window, operand 0, single buffered']
    %8 = vsyncpa [#allocation3], 0
    %9 = vsyncpa [#allocation6], 0
    %10 = vsyncpa [#allocation4], 0
    // Predicated region
    $region2: #{tpu_custom_call.1} parent=1 // pred_check
      _
    $region3: #{tpu_custom_call.1} parent=1 // pred_check_branch
      %12 = sbr.rel (0) target = $region5
    $region4: #{tpu_custom_call.1} parent=1 // pred_region
      %s14 = ssub.s32 512, 512
      %15 = vsyncadd [#allocation3], %s14
      %s16 = sshll.u32 [#allocation2], 4
      %s17 = int_to_ptr.vmem [resolvable:$true] %s16
      %22 = dma.hbm_to_vmem [thread:$0]  %s0, 512, %s17, [#allocation3], 128, 128, 8
    $region5: #{tpu_custom_call.1} parent=1 // pred_fallthru
      _
    // Predicated region
    $region6: #{tpu_custom_call.1} parent=1 // pred_check
      _
    $region7: #{tpu_custom_call.1} parent=1 // pred_check_branch
      %24 = sbr.rel (0) target = $region9
    $region8: #{tpu_custom_call.1} parent=1 // pred_region
      %s26 = ssub.s32 512, 512
      %27 = vsyncadd [#allocation6], %s26
      %s28 = sshll.u32 [#allocation5], 4
      %s29 = int_to_ptr.vmem [resolvable:$true] %s28
      %34 = dma.hbm_to_vmem [thread:$0]  %s1, 512, %s29, [#allocation6], 128, 128, 8
    $region9: #{tpu_custom_call.1} parent=1 // pred_fallthru
      _
    // Predicated region
    $region10: #{tpu_custom_call.1} parent=1 // pred_check
      _
    $region11: #{tpu_custom_call.1} parent=1 // pred_check_branch
      %36 = sbr.rel (0) target = $region13
    $region12: #{tpu_custom_call.1} parent=1 // pred_region
      _
    $region13: #{tpu_custom_call.1} parent=1 // pred_fallthru
      _
    // Predicated region
    $region14: #{tpu_custom_call.1} parent=1 // pred_check
      _
    $region15: #{tpu_custom_call.1} parent=1 // pred_check_branch
      %38 = sbr.rel (0) target = $region17
    $region16: #{tpu_custom_call.1} parent=1 // pred_region
      %39 = dma.done [#allocation3], 512
    $region17: #{tpu_custom_call.1} parent=1 // pred_fallthru
      _
    // Predicated region
    $region18: #{tpu_custom_call.1} parent=1 // pred_check
      _
    $region19: #{tpu_custom_call.1} parent=1 // pred_check_branch
      %41 = sbr.rel (0) target = $region21
    $region20: #{tpu_custom_call.1} parent=1 // pred_region
      %42 = dma.done [#allocation6], 512
    $region21: #{tpu_custom_call.1} parent=1 // pred_fallthru
      _
    %v43 = vld [vmem:[#allocation2] sm:$0xff]
    %v44 = vld [vmem:[#allocation2 + $0x8] sm:$0xff]
    %v45 = vld [vmem:[#allocation2 + $0x10] sm:$0xff]
    %v46 = vld [vmem:[#allocation2 + $0x18] sm:$0xff]
    %v47 = vld [vmem:[#allocation5] sm:$0xff]
    %v48 = vld [vmem:[#allocation5 + $0x8] sm:$0xff]
    %v49 = vld [vmem:[#allocation5 + $0x10] sm:$0xff]
    %v50 = vld [vmem:[#allocation5 + $0x18] sm:$0xff]
    %v51 = vld [vmem:[%s2] sm:$0x1]
    %v53 = vlaneseq
    %v54 = vshrl.u32 %v53, 7
    %v55 = vsub.s32 0, %v54
    %v56 = vrot.slane %v51, %v55
    %vm58 = vcmask 261120
    %v60 = vsel %vm58, %v43, 0
    %v63 = vsel %vm58, %v44, 0
    %v66 = vsel %vm58, %v45, 0
    %v69 = vsel %vm58, %v46, 0
    %71 = vmatprep.subr.mxu0 0.0
    %72 = vmatpush1.msra.mxu0 %v47
    %73 = vmatprep.subr.mxu0 0.0
    %74 = vmatpush1.msra.mxu0 %v48
    %75 = vmatprep.subr.mxu0 0.0
    %76 = vmatpush1.msra.mxu0 %v49
    %77 = vmatprep.subr.mxu0 0.0
    %78 = vmatpush1.msra.mxu0 %v50
    %79 = vmatprep.subr.mxu0 0.0
    %80 = vmatpush1.msra.mxu0 0.0
    %81 = vmatprep.subr.mxu0 0.0
    %82 = vmatpush1.msra.mxu0 0.0
    %83 = vmatprep.subr.mxu0 0.0
    %84 = vmatpush1.msra.mxu0 0.0
    %85 = vmatprep.subr.mxu0 0.0
    %86 = vmatpush1.msra.mxu0 0.0
    %87 = vmatprep.subr.mxu0 0.0
    %88 = vmatpush1.msra.mxu0 0.0
    %89 = vmatprep.subr.mxu0 0.0
    %90 = vmatpush1.msra.mxu0 0.0
    %91 = vmatprep.subr.mxu0 0.0
    %92 = vmatpush1.msra.mxu0 0.0
    %93 = vmatprep.subr.mxu0 0.0
    %94 = vmatpush1.msra.mxu0 0.0
    %95 = vmatprep.subr.mxu0 0.0
    %96 = vmatpush1.msra.mxu0 0.0
    %97 = vmatprep.subr.mxu0 0.0
    %98 = vmatpush1.msra.mxu0 0.0
    %99 = vmatprep.subr.mxu0 0.0
    %100 = vmatpush1.msra.mxu0 0.0
    %101 = vmatprep.subr.mxu0 0.0
    %102 = vmatpush1.msra.mxu0 0.0
    %103 = vmatprep.subr.mxu0 0.0
    %104 = vmatpush1.msra.mxu0 0.0
    %105 = vmatprep.subr.mxu0 0.0
    %106 = vmatpush1.msra.mxu0 0.0
    %107 = vmatprep.subr.mxu0 0.0
    %108 = vmatpush1.msra.mxu0 0.0
    %109 = vmatprep.subr.mxu0 0.0
    %110 = vmatpush1.msra.mxu0 0.0
    %111 = vmatprep.subr.mxu0 0.0
    %112 = vmatpush1.msra.mxu0 0.0
    %113 = vmatprep.subr.mxu0 0.0
    %114 = vmatpush1.msra.mxu0 0.0
    %115 = vmatprep.subr.mxu0 0.0
    %116 = vmatpush1.msra.mxu0 0.0
    %117 = vmatprep.subr.mxu0 0.0
    %118 = vmatpush1.msra.mxu0 0.0
    %119 = vmatprep.subr.mxu0 0.0
    %120 = vmatpush1.msra.mxu0 0.0
    %121 = vmatprep.subr.mxu0 0.0
    %122 = vmatpush1.msra.mxu0 0.0
    %123 = vmatprep.subr.mxu0 0.0
    %124 = vmatpush1.msra.mxu0 0.0
    %125 = vmatprep.subr.mxu0 0.0
    %126 = vmatpush1.msra.mxu0 0.0
    %127 = vmatprep.subr.mxu0 0.0
    %128 = vmatpush1.msra.mxu0 0.0
    %129 = vmatprep.subr.mxu0 0.0
    %130 = vmatpush1.msra.mxu0 0.0
    %131 = vmatprep.subr.mxu0 0.0
    %132 = vmatpush1.msra.mxu0 0.0
    %133 = vmatprep.subr.mxu0 0.0
    %134 = vmatpush1.msra.mxu0 0.0
    %135 = vmatprep.mubr.f32.mxu0 0.0
    %136 = vmatmul.mubr.f32.gmra.mrb[0].mxu0 %v60
    %v137 = vpop.f32.mrb[0].mxu0
    %v138 = vadd.f32 %v56, %v137
    %v139 = vpop.f32.mrb[0].mxu0
    %140 = vmatprep.mubr.f32.mxu0 0.0
    %141 = vmatmul.mubr.f32.gmra.mrb[0].mxu0 %v63
    %v142 = vpop.f32.mrb[0].mxu0
    %v143 = vadd.f32 %v56, %v142
    %v144 = vpop.f32.mrb[0].mxu0
    %145 = vmatprep.mubr.f32.mxu0 0.0
    %146 = vmatmul.mubr.f32.gmra.mrb[0].mxu0 %v66
    %v147 = vpop.f32.mrb[0].mxu0
    %v148 = vadd.f32 %v56, %v147
    %v149 = vpop.f32.mrb[0].mxu0
    %150 = vmatprep.mubr.f32.mxu0 0.0
    %151 = vmatmul.mubr.f32.gmra.mrb[0].mxu0 %v69
    %v152 = vpop.f32.mrb[0].mxu0
    %v153 = vadd.f32 %v56, %v152
    %v154 = vpop.f32.mrb[0].mxu0
    %155 = vdwg.mxu0
    %156 = vmax.xlane.f32.xlu0 %v138
    %v157 = vpop.xlane.xlu0 %156
    %158 = vmax.xlane.f32.xlu0 %v143
    %v159 = vpop.xlane.xlu0 %158
    %160 = vmax.xlane.f32.xlu0 %v148
    %v161 = vpop.xlane.xlu0 %160
    %162 = vmax.xlane.f32.xlu0 %v153
    %v163 = vpop.xlane.xlu0 %162
    %v164 = vsub.f32 %v138, %v157
    %v165 = vsub.f32 %v143, %v159
    %v166 = vsub.f32 %v148, %v161
    %v167 = vsub.f32 %v153, %v163
    %v168 = vmul.f32 %v164, 1.442695
    %v169 = vpow.pop %v168
    %v170 = vmul.f32 %v165, 1.442695
    %v171 = vpow.pop %v170
    %v172 = vmul.f32 %v166, 1.442695
    %v173 = vpow.pop %v172
    %v174 = vmul.f32 %v167, 1.442695
    %v175 = vpow.pop %v174
    %176 = vadd.xlane.f32.xlu0 %v169
    %v177 = vpop.xlane.xlu0 %176
    %178 = vadd.xlane.f32.xlu0 %v171
    %v179 = vpop.xlane.xlu0 %178
    %180 = vadd.xlane.f32.xlu0 %v173
    %v181 = vpop.xlane.xlu0 %180
    %182 = vadd.xlane.f32.xlu0 %v175
    %v183 = vpop.xlane.xlu0 %182
    %v184 = vrcp.pop %v177
    %v185 = vmul.f32 1.0, %v184
    %v186 = vrcp.pop %v179
    %v187 = vmul.f32 1.0, %v186
    %v188 = vrcp.pop %v181
    %v189 = vmul.f32 1.0, %v188
    %v190 = vrcp.pop %v183
    %v191 = vmul.f32 1.0, %v190
    %v192 = vmul.f32 %v169, %v185
    %v193 = vmul.f32 %v171, %v187
    %v194 = vmul.f32 %v173, %v189
    %v195 = vmul.f32 %v175, %v191
    %196 = vst [vmem:[#allocation7] sm:$0xff] %v192
    %197 = vst [vmem:[#allocation7 + $0x8] sm:$0xff] %v193
    %198 = vst [vmem:[#allocation7 + $0x10] sm:$0xff] %v194
    %199 = vst [vmem:[#allocation7 + $0x18] sm:$0xff] %v195
    // Predicated region
    $region22: #{tpu_custom_call.1} parent=1 // pred_check
      _
    $region23: #{tpu_custom_call.1} parent=1 // pred_check_branch
      %201 = sbr.rel (0) target = $region25
    $region24: #{tpu_custom_call.1} parent=1 // pred_region
      %s203 = ssub.s32 512, 512
      %204 = vsyncadd [#allocation4], %s203
      %s205 = sshll.u32 [#allocation7], 4
      %s206 = int_to_ptr.vmem [resolvable:$true] %s205
      %211 = dma.vmem_to_hbm [thread:$0]  %s206, 512, %s3, [#allocation4], 128, 128, 8
    $region25: #{tpu_custom_call.1} parent=1 // pred_fallthru
      _
    // Predicated region
    $region26: #{tpu_custom_call.1} parent=1 // pred_check
      _
    $region27: #{tpu_custom_call.1} parent=1 // pred_check_branch
      %213 = sbr.rel (0) target = $region29
    $region28: #{tpu_custom_call.1} parent=1 // pred_region
      %214 = dma.done [#allocation4], 512
    $region29: #{tpu_custom_call.1} parent=1 // pred_fallthru
      _
    %215 = vsyncpa [#allocation3], 1
    %216 = vsyncpa [#allocation6], 1
    %217 = vsyncpa [#allocation4], 1

</llo_original>
